<compile_context>
chip_gen: v6e
topology: v6e:2x2x1
jax: 0.10.0
libtpu: 0.0.40
codegen_flags: <defaults>
</compile_context>

<pallas_src>
import jax
import jax.numpy as jnp
from jax.experimental import pallas as pl
from jax.experimental.pallas import tpu as pltpu


TM = 512                         # rows per M tile on the (rare) tiled path
FUSE_MAX_M = 1024                # single fused kernel while M fits one tile
FUSE_VMEM_BYTES = 12 * 1024 * 1024
STATS_ROWS = 8                   # sublane-aligned stats block on the tiled path


def _round_up(x, m):
    return (x + m - 1) // m * m


def _vmem_limit(buffer_bytes):
    """Scoped-VMEM limit from actual buffer sizes: x2 headroom, floor 32 MiB
    (compiler internal scratch), cap 64 MiB (v7x physical VMEM)."""
    return int(min(64 * 1024 * 1024, max(32 * 1024 * 1024, 2 * buffer_bytes)))


# ----------------------------- Pallas kernels ------------------------------

def fused_conv_bn_elu_kernel(x_ref, w_ref, gamma_ref, beta_ref, o_ref):
    """Whole ConvBlock for a single M tile: conv-as-matmul + BatchNorm (batch
    stats, two-pass centered variance) + ELU, one HBM write.

    x_ref:     [m, K]   bf16 im2col patches
    w_ref:     [K, Cp]  bf16 spectrally-normalized weight (Cp = pad128(Cout))
    gamma_ref: [1, Cp]  f32  BN weight (zero in padded channels)
    beta_ref:  [1, Cp]  f32  BN bias   (zero in padded channels)
    o_ref:     [m, Cp]  bf16 activations
    """
    y = jnp.dot(x_ref[...], w_ref[...], preferred_element_type=jnp.float32)
    inv_m = 1.0 / y.shape[0]
    mean = jnp.sum(y, axis=0, keepdims=True) * inv_m            # [1, Cp] f32
    centered = y - mean
    var = jnp.sum(centered * centered, axis=0, keepdims=True) * inv_m
    scale = gamma_ref[...] * jax.lax.rsqrt(var + 1e-5)          # folded BN affine
    z = centered * scale + beta_ref[...]
    o_ref[...] = jnp.where(z > 0, z, jnp.exp(jnp.minimum(z, 0.0)) - 1.0
                           ).astype(o_ref.dtype)


def matmul_stats_kernel(x_ref, w_ref, y_ref, stats_ref):
    """Tiled path, pass A: matmul tile + per-tile per-channel partial stats.

    stats_ref: [8, Cp] f32; only rows 0 (sum) and 1 (sum of squares) are written
    (rows 2..7 are never read by the glue).
    """
    y = jnp.dot(x_ref[...], w_ref[...], preferred_element_type=jnp.float32)
    y_ref[...] = y.astype(y_ref.dtype)
    stats_ref[0:1, :] = jnp.sum(y, axis=0, keepdims=True)
    stats_ref[1:2, :] = jnp.sum(y * y, axis=0, keepdims=True)


def bn_elu_kernel(y_ref, scale_ref, shift_ref, o_ref):
    """Tiled path, pass B: folded-BN FMA + ELU.  Output aliases y."""
    z = y_ref[...].astype(jnp.float32) * scale_ref[...] + shift_ref[...]
    o_ref[...] = jnp.where(z > 0, z, jnp.exp(jnp.minimum(z, 0.0)) - 1.0
                           ).astype(o_ref.dtype)


def head_kernel(x_ref, w_ref, b_ref, o_ref):
    """AdaptiveAvgPool2d(1)+Flatten+Linear folded into one lane-dense dot.

    x_ref: [N, F] bf16 (F = H*W*C), w_ref: [F, 1] f32 (1/(H*W) folded in),
    b_ref: [1, 1] f32, o_ref: [N, 1] f32.
    """
    x = x_ref[...].astype(jnp.float32)
    o_ref[...] = (jnp.dot(x, w_ref[...], preferred_element_type=jnp.float32)
                  + b_ref[...])


# ------------------------------- JAX glue ----------------------------------

def spectral_normalize(w, u, eps=1e-12):
    """PyTorch spectral_norm semantics: one power iteration, weight / sigma."""
    cout = w.shape[0]
    w_mat = w.reshape(cout, -1)
    u = u / (jnp.linalg.norm(u) + eps)
    v = w_mat.T @ u
    v = v / (jnp.linalg.norm(v) + eps)
    u = w_mat @ v
    u = u / (jnp.linalg.norm(u) + eps)
    sigma = u @ (w_mat @ v)
    return w / sigma


def im2col(x_nhwc, k=4, s=2, p=1):
    """Extract conv patches with 16 static strided slices (no gather).

    Patch feature ordering is (Cin, kh, kw), kw fastest, matching PyTorch's
    w.reshape(Cout, Cin*kh*kw) flattening.
    """
    x = jnp.pad(x_nhwc, ((0, 0), (p, p), (p, p), (0, 0)))
    n, hp, wp, c = x.shape
    ho = (hp - k) // s + 1
    wo = (wp - k) // s + 1
    cols = []
    for dh in range(k):
        for dw in range(k):
            cols.append(x[:, dh:dh + s * (ho - 1) + 1:s,
                          dw:dw + s * (wo - 1) + 1:s, :])      # [N, Ho, Wo, C]
    pat = jnp.stack(cols, axis=-1)                              # [N,Ho,Wo,C,16]
    return pat.reshape(n * ho * wo, c * k * k), ho, wo


def _conv_block_tiled(patches, w_mat, gamma_p, beta_p, m, kdim, cp):
    """Fallback for large M: tiled matmul+stats kernel, then BN+ELU epilogue."""
    tm = min(TM, _round_up((m + 1) // 2, 16))     # >=2 tiles -> both TCs on v7x
    m_pad = _round_up(m, tm)
    grid_m = m_pad // tm
    if m_pad != m:                                # zero rows: no effect on sums
        patches = jnp.pad(patches, ((0, m_pad - m), (0, 0)))

    bytes_a = (3 * tm * kdim * 2 + kdim * cp * 2 + 2 * tm * cp * 2
               + 2 * STATS_ROWS * cp * 4 + 2 * tm * cp * 4)
    y, stats = pl.pallas_call(
        matmul_stats_kernel,
        grid=(grid_m,),
        out_shape=[jax.ShapeDtypeStruct((m_pad, cp), jnp.bfloat16),
                   jax.ShapeDtypeStruct((grid_m * STATS_ROWS, cp), jnp.float32)],
        in_specs=[pl.BlockSpec((tm, kdim), lambda i: (i, 0),
                               pipeline_mode=pl.Buffered(3)),
                  pl.BlockSpec((kdim, cp), lambda i: (0, 0))],
        out_specs=[pl.BlockSpec((tm, cp), lambda i: (i, 0)),
                   pl.BlockSpec((STATS_ROWS, cp), lambda i: (i, 0))],
        compiler_params=pltpu.CompilerParams(
            dimension_semantics=("parallel",),
            vmem_limit_bytes=_vmem_limit(bytes_a)),
        cost_estimate=pl.CostEstimate(
            flops=2 * m_pad * kdim * cp,
            transcendentals=0,
            bytes_accessed=(m_pad * kdim * 2 + kdim * cp * 2
                            + m_pad * cp * 2 + grid_m * 2 * cp * 4)),
    )(patches, w_mat)

    stats = stats.reshape(grid_m, STATS_ROWS, cp)
    total_sum = jnp.sum(stats[:, 0, :], axis=0)
    total_ssq = jnp.sum(stats[:, 1, :], axis=0)
    mean = total_sum / m                                   # true row count
    var = jnp.maximum(total_ssq / m - mean * mean, 0.0)    # biased var (PyTorch)
    scale = (gamma_p * jax.lax.rsqrt(var + 1e-5)).astype(jnp.float32)   # [1, cp]
    shift = (beta_p - mean.reshape(1, cp) * scale).astype(jnp.float32)  # [1, cp]

    bytes_b = 2 * (2 * tm * cp * 2) + 2 * cp * 4 + 2 * tm * cp * 4
    out = pl.pallas_call(
        bn_elu_kernel,
        grid=(grid_m,),
        out_shape=jax.ShapeDtypeStruct((m_pad, cp), jnp.bfloat16),
        in_specs=[pl.BlockSpec((tm, cp), lambda i: (i, 0)),
                  pl.BlockSpec((1, cp), lambda i: (0, 0)),
                  pl.BlockSpec((1, cp), lambda i: (0, 0))],
        out_specs=pl.BlockSpec((tm, cp), lambda i: (i, 0)),
        input_output_aliases={0: 0},          # y is dead after this -> reuse buffer
        compiler_params=pltpu.CompilerParams(
            dimension_semantics=("parallel",),
            vmem_limit_bytes=_vmem_limit(bytes_b)),
        cost_estimate=pl.CostEstimate(
            flops=2 * m_pad * cp,
            transcendentals=m_pad * cp,
            bytes_accessed=2 * m_pad * cp * 2 + 2 * cp * 4),
    )(y, scale, shift)
    return out[:m]


def conv_block(x_nhwc, w_sn, gamma, beta):
    n = x_nhwc.shape[0]
    cout = w_sn.shape[0]
    patches, ho, wo = im2col(x_nhwc)                 # bf16 [M, K], static slices
    m, kdim = patches.shape
    cp = _round_up(cout, 128)                        # lane-dense output channels

    w_mat = jnp.transpose(w_sn.reshape(cout, -1))                        # [K, Cout]
    w_mat = jnp.pad(w_mat, ((0, 0), (0, cp - cout))).astype(jnp.bfloat16)
    gamma_p = jnp.pad(gamma, (0, cp - cout)).reshape(1, cp).astype(jnp.float32)
    beta_p = jnp.pad(beta, (0, cp - cout)).reshape(1, cp).astype(jnp.float32)

    fused_bytes = (m * kdim * 2 + kdim * cp * 2 + m * cp * 2
                   + 2 * cp * 4 + 3 * m * cp * 4)    # incl. f32 temporaries
    if m <= FUSE_MAX_M and fused_bytes <= FUSE_VMEM_BYTES:
        # Single fused kernel: no row padding (full-array blocks), no y round trip.
        out = pl.pallas_call(
            fused_conv_bn_elu_kernel,
            grid=(1,),
            out_shape=jax.ShapeDtypeStruct((m, cp), jnp.bfloat16),
            in_specs=[pl.BlockSpec((m, kdim), lambda i: (0, 0)),
                      pl.BlockSpec((kdim, cp), lambda i: (0, 0)),
                      pl.BlockSpec((1, cp), lambda i: (0, 0)),
                      pl.BlockSpec((1, cp), lambda i: (0, 0))],
            out_specs=pl.BlockSpec((m, cp), lambda i: (0, 0)),
            compiler_params=pltpu.CompilerParams(
                dimension_semantics=("arbitrary",),
                vmem_limit_bytes=_vmem_limit(fused_bytes)),
            cost_estimate=pl.CostEstimate(
                flops=2 * m * kdim * cp + 8 * m * cp,
                transcendentals=2 * m * cp,
                bytes_accessed=(m * kdim * 2 + kdim * cp * 2
                                + m * cp * 2 + 2 * cp * 4)),
        )(patches, w_mat, gamma_p, beta_p)
    else:
        out = _conv_block_tiled(patches, w_mat, gamma_p, beta_p, m, kdim, cp)

    # Channel un-pad; XLA fuses this slice into the next layer's im2col pad/stack.
    return out[:, :cout].reshape(n, ho, wo, cout)


def cls_head(x_nhwc, lin_w, lin_b):
    n, h, w, c = x_nhwc.shape
    f = h * w * c
    x2 = x_nhwc.reshape(n, f)                                   # bf16, lane-dense
    w_vec = (jnp.tile(lin_w.reshape(-1), h * w) / (h * w)
             ).reshape(f, 1).astype(jnp.float32)                # pool folded in
    b = lin_b.reshape(1, 1).astype(jnp.float32)
    bytes_needed = n * f * 2 + f * 4 + n * 4 + 4
    return pl.pallas_call(
        head_kernel,
        grid=(1,),
        out_shape=jax.ShapeDtypeStruct((n, 1), jnp.float32),
        in_specs=[pl.BlockSpec((n, f), lambda i: (0, 0)),
                  pl.BlockSpec((f, 1), lambda i: (0, 0)),
                  pl.BlockSpec((1, 1), lambda i: (0, 0))],
        out_specs=pl.BlockSpec((n, 1), lambda i: (0, 0)),
        compiler_params=pltpu.CompilerParams(
            vmem_limit_bytes=_vmem_limit(bytes_needed)),
        cost_estimate=pl.CostEstimate(
            flops=2 * n * f,
            transcendentals=0,
            bytes_accessed=n * f * 2 + f * 4 + n * 4),
    )(x2, w_vec, b)


def init_gand_params(key, hidden_dim, depth, in_channels=3):
    conv_params = []
    cin = in_channels
    for i in range(depth):
        cout = hidden_dim * 2 ** i
        key, wk, uk = jax.random.split(key, 3)
        conv_params.append(dict(
            w=jax.random.normal(wk, (cout, cin, 4, 4), jnp.float32) * 0.05,
            u=jax.random.normal(uk, (cout,), jnp.float32),   # spectral-norm u
            gamma=jnp.ones((cout,), jnp.float32),            # BN weight
            beta=jnp.zeros((cout,), jnp.float32),            # BN bias
        ))
        cin = cout
    key, wk, bk = jax.random.split(key, 3)
    lin_w = jax.random.normal(wk, (1, cin), jnp.float32) * 0.05
    lin_b = jax.random.normal(bk, (1,), jnp.float32) * 0.05
    return conv_params, (lin_w, lin_b)


def gand_forward(x_nchw, conv_params, head_params):
    # NHWC, bf16 activations on the matmul path; BN/ELU math stays f32 in-kernel.
    x = jnp.transpose(x_nchw, (0, 2, 3, 1)).astype(jnp.bfloat16)
    for p in conv_params:
        w_sn = spectral_normalize(p["w"], p["u"])
        x = conv_block(x, w_sn, p["gamma"], p["beta"])
    return cls_head(x, *head_params)


if __name__ == "__main__":
    key = jax.random.PRNGKey(0)
    pkey, xkey = jax.random.split(key)

    hidden_dim, depth = 8, 3
    conv_params, head_params = init_gand_params(pkey, hidden_dim, depth)

    # Small input consistent with the module: N=2, C=3 (RGB), 16x16 spatial.
    x = jax.random.normal(xkey, (2, 3, 16, 16), jnp.float32)

    out = gand_forward(x, conv_params, head_params)
    out = jax.block_until_ready(out)
    assert out.shape == (2, 1), out.shape
    print("KERNEL_OK")
</pallas_src>

<mosaic_0001>
module attributes {stable_mosaic.version = 11 : i64} {
  func.func @fused_conv_bn_elu_kernel(%arg0: i32, %arg1: memref<128x48xbf16, #tpu.memory_space<vmem>>, %arg2: memref<48x128xbf16, #tpu.memory_space<vmem>>, %arg3: memref<1x128xf32, #tpu.memory_space<vmem>>, %arg4: memref<1x128xf32, #tpu.memory_space<vmem>>, %arg5: memref<128x128xbf16, #tpu.memory_space<vmem>>) attributes {dimension_semantics = [#tpu.dimension_semantics<arbitrary>], iteration_bounds = array<i64: 1>, scalar_prefetch = 0 : i64, scratch_operands = 0 : i64, tpu.core_type = #tpu.core_type<tc>, window_params = [{pipeline_mode = #tpu.pipeline_mode<synchronous>, transform_indices = @transform_0, window_bounds = array<i64: 128, 48>}, {pipeline_mode = #tpu.pipeline_mode<synchronous>, transform_indices = @transform_1, window_bounds = array<i64: 48, 128>}, {pipeline_mode = #tpu.pipeline_mode<synchronous>, transform_indices = @transform_2, window_bounds = array<i64: 1, 128>}, {pipeline_mode = #tpu.pipeline_mode<synchronous>, transform_indices = @transform_3, window_bounds = array<i64: 1, 128>}, {pipeline_mode = #tpu.pipeline_mode<synchronous>, transform_indices = @transform_4, window_bounds = array<i64: 128, 128>}]} {
    %c0 = arith.constant 0 : index
    %c0_0 = arith.constant 0 : index
    %0 = vector.load %arg1[%c0, %c0_0] : memref<128x48xbf16, #tpu.memory_space<vmem>>, vector<128x48xbf16>
    %c0_1 = arith.constant 0 : index
    %c0_2 = arith.constant 0 : index
    %1 = vector.load %arg2[%c0_1, %c0_2] : memref<48x128xbf16, #tpu.memory_space<vmem>>, vector<48x128xbf16>
    %cst = arith.constant dense<0.000000e+00> : vector<128x128xf32>
    %2 = tpu.matmul %0, %1, %cst {dimension_numbers = #tpu.dot_dimension_numbers<[1], [0], [0], [1], [0, 0, 1, 1], [], []>} : vector<128x48xbf16>, vector<48x128xbf16>, vector<128x128xf32> -> vector<128x128xf32>
    %cst_3 = arith.constant dense<0.000000e+00> : vector<128xf32>
    %3 = vector.multi_reduction <add>, %2, %cst_3 [0] : vector<128x128xf32> to vector<128xf32>
    %4 = vector.shape_cast %3 : vector<128xf32> to vector<1x128xf32>
    %cst_4 = arith.constant 7.812500e-03 : f32
    %5 = vector.broadcast %cst_4 : f32 to vector<1x128xf32>
    %6 = arith.mulf %4, %5 : vector<1x128xf32>
    %7 = vector.broadcast %6 : vector<1x128xf32> to vector<128x128xf32>
    %8 = arith.subf %2, %7 : vector<128x128xf32>
    %9 = arith.mulf %8, %8 : vector<128x128xf32>
    %cst_5 = arith.constant dense<0.000000e+00> : vector<128xf32>
    %10 = vector.multi_reduction <add>, %9, %cst_5 [0] : vector<128x128xf32> to vector<128xf32>
    %11 = vector.shape_cast %10 : vector<128xf32> to vector<1x128xf32>
    %cst_6 = arith.constant 7.812500e-03 : f32
    %12 = vector.broadcast %cst_6 : f32 to vector<1x128xf32>
    %13 = arith.mulf %11, %12 : vector<1x128xf32>
    %c0_7 = arith.constant 0 : index
    %c0_8 = arith.constant 0 : index
    %14 = vector.load %arg3[%c0_7, %c0_8] : memref<1x128xf32, #tpu.memory_space<vmem>>, vector<1x128xf32>
    %cst_9 = arith.constant 9.99999974E-6 : f32
    %15 = vector.broadcast %cst_9 : f32 to vector<1x128xf32>
    %16 = arith.addf %13, %15 : vector<1x128xf32>
    %17 = math.rsqrt %16 : vector<1x128xf32>
    %18 = arith.mulf %14, %17 : vector<1x128xf32>
    %19 = vector.broadcast %18 : vector<1x128xf32> to vector<128x128xf32>
    %20 = arith.mulf %8, %19 : vector<128x128xf32>
    %c0_10 = arith.constant 0 : index
    %c0_11 = arith.constant 0 : index
    %21 = vector.load %arg4[%c0_10, %c0_11] : memref<1x128xf32, #tpu.memory_space<vmem>>, vector<1x128xf32>
    %22 = vector.broadcast %21 : vector<1x128xf32> to vector<128x128xf32>
    %23 = arith.addf %20, %22 : vector<128x128xf32>
    %cst_12 = arith.constant 0.000000e+00 : f32
    %24 = vector.broadcast %cst_12 : f32 to vector<128x128xf32>
    %25 = arith.cmpf ogt, %23, %24 : vector<128x128xf32>
    %cst_13 = arith.constant 0.000000e+00 : f32
    %26 = vector.broadcast %cst_13 : f32 to vector<128x128xf32>
    %27 = arith.minimumf %23, %26 : vector<128x128xf32>
    %28 = math.exp %27 : vector<128x128xf32>
    %cst_14 = arith.constant 1.000000e+00 : f32
    %29 = vector.broadcast %cst_14 : f32 to vector<128x128xf32>
    %30 = arith.subf %28, %29 : vector<128x128xf32>
    %31 = arith.select %25, %23, %30 : vector<128x128xi1>, vector<128x128xf32>
    %32 = arith.truncf %31 : vector<128x128xf32> to vector<128x128xbf16>
    %c0_15 = arith.constant 0 : index
    %c0_16 = arith.constant 0 : index
    %33 = vector.load %arg5[%c0_15, %c0_16] : memref<128x128xbf16, #tpu.memory_space<vmem>>, vector<128x128xbf16>
    tpu.vector_store %arg5[%c0_15, %c0_16], %32 {strides = array<i32>} : memref<128x128xbf16, #tpu.memory_space<vmem>>, vector<128x128xbf16>,
    return
  }
  func.func @transform_0(%arg0: i32) -> (i32, i32) {
    %c0_i32 = arith.constant 0 : i32
    %c0_i32_0 = arith.constant 0 : i32
    %c0_i32_1 = arith.constant 0 : i32
    return %c0_i32, %c0_i32_0 : i32, i32
  }
  func.func @transform_1(%arg0: i32) -> (i32, i32) {
    %c0_i32 = arith.constant 0 : i32
    %c0_i32_0 = arith.constant 0 : i32
    %c0_i32_1 = arith.constant 0 : i32
    return %c0_i32, %c0_i32_0 : i32, i32
  }
  func.func @transform_2(%arg0: i32) -> (i32, i32) {
    %c0_i32 = arith.constant 0 : i32
    %c0_i32_0 = arith.constant 0 : i32
    %c0_i32_1 = arith.constant 0 : i32
    return %c0_i32, %c0_i32_0 : i32, i32
  }
  func.func @transform_3(%arg0: i32) -> (i32, i32) {
    %c0_i32 = arith.constant 0 : i32
    %c0_i32_0 = arith.constant 0 : i32
    %c0_i32_1 = arith.constant 0 : i32
    return %c0_i32, %c0_i32_0 : i32, i32
  }
  func.func @transform_4(%arg0: i32) -> (i32, i32) {
    %c0_i32 = arith.constant 0 : i32
    %c0_i32_0 = arith.constant 0 : i32
    %c0_i32_1 = arith.constant 0 : i32
    return %c0_i32, %c0_i32_0 : i32, i32
  }
}

</mosaic_0001>

<llo_original>
// kernel: tpu_custom_call.1
$region0: #{tpu_custom_call.1}
  #allocation0 [shape = 'u32[]', space=smem, size = 0x4, offset = 0x4, fixed_abs, tag = 'smem constant byte address 0x4 - core index']
  #allocation1 [shape = 'u32[144,128]{1,0:T(1,128)}', space=vmem, size = 0x12000, scoped, tag = 'internal scratch']
  %s0 = inlined_call_operand.vmem [shape: bf16[128,48], index: 0, kind: input, shape index: {}]
  %s1 = inlined_call_operand.vmem [shape: bf16[48,128], index: 1, kind: input, shape index: {}]
  %s2 = inlined_call_operand.vmem [shape: f32[1,128], index: 2, kind: input, shape index: {}]
  %s3 = inlined_call_operand.vmem [shape: f32[1,128], index: 3, kind: input, shape index: {}]
  %s4 = inlined_call_operand.hbm [shape: bf16[128,128], index: 4, kind: output, shape index: {}]
  %s5 = sld [smem:[#allocation0]]
  $region26: #{tpu_custom_call.1} parent=0
    _
  %s7 = ssub.s32 1, %s5
  %s8 = scalar_select 0, %s7, %s5
  $region1: #{tpu_custom_call.1} parent=0
    #allocation2 [shape = 'u8[32768]{0}', space=vmem, size = 0x8000, scoped, tag = 'output window, operand 0, single buffered']
    #allocation3 [shape = 's32[1]{0}', space=sflag, size = 0x4, scoped, tag = 'scoped memory for tpu_custom_call.1']
    %9 = vsyncpa [#allocation3], 0
    // Predicated region
    $region2: #{tpu_custom_call.1} parent=1 // pred_check
      _
    $region3: #{tpu_custom_call.1} parent=1 // pred_check_branch
      %11 = sbr.rel (0) target = $region5
    $region4: #{tpu_custom_call.1} parent=1 // pred_region
      _
    $region5: #{tpu_custom_call.1} parent=1 // pred_fallthru
      _
    // Predicated region
    $region6: #{tpu_custom_call.1} parent=1 // pred_check
      _
    $region7: #{tpu_custom_call.1} parent=1 // pred_check_branch
      %13 = sbr.rel (0) target = $region9
    $region8: #{tpu_custom_call.1} parent=1 // pred_region
      _
    $region9: #{tpu_custom_call.1} parent=1 // pred_fallthru
      _
    // Predicated region
    $region10: #{tpu_custom_call.1} parent=1 // pred_check
      _
    $region11: #{tpu_custom_call.1} parent=1 // pred_check_branch
      %15 = sbr.rel (0) target = $region13
    $region12: #{tpu_custom_call.1} parent=1 // pred_region
      _
    $region13: #{tpu_custom_call.1} parent=1 // pred_fallthru
      _
    // Predicated region
    $region14: #{tpu_custom_call.1} parent=1 // pred_check
      _
    $region15: #{tpu_custom_call.1} parent=1 // pred_check_branch
      %17 = sbr.rel (0) target = $region17
    $region16: #{tpu_custom_call.1} parent=1 // pred_region
      _
    $region17: #{tpu_custom_call.1} parent=1 // pred_fallthru
      _
    %v19 = vld [vmem:[%s0] sm:$0xf]
    %v20 = vld [vmem:[%s0 + $0x4] sm:$0xf]
    %v21 = vld [vmem:[%s0 + $0x8] sm:$0xf]
    %v22 = vld [vmem:[%s0 + $0xc] sm:$0xf]
    %v23 = vld [vmem:[%s0 + $0x10] sm:$0xf]
    %v24 = vld [vmem:[%s0 + $0x14] sm:$0xf]
    %v25 = vld [vmem:[%s0 + $0x18] sm:$0xf]
    %v26 = vld [vmem:[%s0 + $0x1c] sm:$0xf]
    %v27 = vld [vmem:[%s0 + $0x20] sm:$0xf]
    %v28 = vld [vmem:[%s0 + $0x24] sm:$0xf]
    %v29 = vld [vmem:[%s0 + $0x28] sm:$0xf]
    %v30 = vld [vmem:[%s0 + $0x2c] sm:$0xf]
    %v31 = vld [vmem:[%s0 + $0x30] sm:$0xf]
    %v32 = vld [vmem:[%s0 + $0x34] sm:$0xf]
    %v33 = vld [vmem:[%s0 + $0x38] sm:$0xf]
    %v34 = vld [vmem:[%s0 + $0x3c] sm:$0xf]
    %v35 = vld [vmem:[%s1] sm:$0xf]
    %v36 = vld [vmem:[%s1 + $0x4] sm:$0xf]
    %v37 = vld [vmem:[%s1 + $0x8] sm:$0xf]
    %v38 = vld [vmem:[%s1 + $0xc] sm:$0xf]
    %v39 = vld [vmem:[%s1 + $0x10] sm:$0xf]
    %v40 = vld [vmem:[%s1 + $0x14] sm:$0xf]
    %v57 = vunpack.c.l.b16 %v19
    %v58 = vunpack.c.l.b16 %v20
    %v59 = vunpack.c.l.b16 %v21
    %v60 = vunpack.c.l.b16 %v22
    %v61 = vunpack.c.l.b16 %v23
    %v62 = vunpack.c.l.b16 %v24
    %v63 = vunpack.c.l.b16 %v25
    %v64 = vunpack.c.l.b16 %v26
    %v65 = vunpack.c.l.b16 %v27
    %v66 = vunpack.c.l.b16 %v28
    %v67 = vunpack.c.l.b16 %v29
    %v68 = vunpack.c.l.b16 %v30
    %v69 = vunpack.c.l.b16 %v31
    %v70 = vunpack.c.l.b16 %v32
    %v71 = vunpack.c.l.b16 %v33
    %v72 = vunpack.c.l.b16 %v34
    %v73 = vpack.c.b16 %v58, %v57
    %v74 = vpack.c.b16 %v60, %v59
    %v75 = vpack.c.b16 %v62, %v61
    %v76 = vpack.c.b16 %v64, %v63
    %v77 = vpack.c.b16 %v66, %v65
    %v78 = vpack.c.b16 %v68, %v67
    %v79 = vpack.c.b16 %v70, %v69
    %v80 = vpack.c.b16 %v72, %v71
    %v87 = vunpack.c.l.b16 %v35
    %v88 = vunpack.c.l.b16 %v36
    %v89 = vunpack.c.l.b16 %v37
    %v90 = vunpack.c.l.b16 %v38
    %v91 = vunpack.c.l.b16 %v39
    %v92 = vunpack.c.l.b16 %v40
    %v93 = vpack.c.b16 %v88, %v87
    %v94 = vpack.c.b16 %v90, %v89
    %v95 = vpack.c.b16 %v92, %v91
    %vm99 = vcmask 392192
    %v101 = vsel %vm99, %v73, 0
    %v104 = vsel %vm99, %v74, 0
    %v107 = vsel %vm99, %v75, 0
    %v110 = vsel %vm99, %v76, 0
    %v113 = vsel %vm99, %v77, 0
    %v116 = vsel %vm99, %v78, 0
    %v119 = vsel %vm99, %v79, 0
    %v122 = vsel %vm99, %v80, 0
    %124 = vmatprep.subr.bf16.mxu0 0
    %125 = vmatpush1.bf16.msra.mxu0 0
    %126 = vmatprep.subr.bf16.mxu0 0
    %127 = vmatpush1.bf16.msra.mxu0 0
    %128 = vmatprep.subr.bf16.mxu0 0
    %129 = vmatpush1.bf16.msra.mxu0 0
    %130 = vmatprep.subr.bf16.mxu0 0
    %131 = vmatpush1.bf16.msra.mxu0 0
    %132 = vmatprep.subr.bf16.mxu0 0
    %133 = vmatpush1.bf16.msra.mxu0 0
    %134 = vmatprep.subr.bf16.mxu0 0
    %135 = vmatpush1.bf16.msra.mxu0 %v95
    %136 = vmatprep.subr.bf16.mxu0 0
    %137 = vmatpush1.bf16.msra.mxu0 %v94
    %138 = vmatprep.subr.bf16.mxu0 0
    %139 = vmatpush1.bf16.msra.mxu0 %v93
    %140 = vmatprep.subr.bf16.mxu0 0
    %141 = vmatpush2.bf16.msra.mxu0 0
    %142 = vmatprep.subr.bf16.mxu0 0
    %143 = vmatpush2.bf16.msra.mxu0 0
    %144 = vmatprep.subr.bf16.mxu0 0
    %145 = vmatpush2.bf16.msra.mxu0 0
    %146 = vmatprep.subr.bf16.mxu0 0
    %147 = vmatpush2.bf16.msra.mxu0 0
    %148 = vmatprep.subr.bf16.mxu0 0
    %149 = vmatpush2.bf16.msra.mxu0 0
    %150 = vmatprep.subr.bf16.mxu0 0
    %151 = vmatpush2.bf16.msra.mxu0 0
    %152 = vmatprep.subr.bf16.mxu0 0
    %153 = vmatpush2.bf16.msra.mxu0 0
    %154 = vmatprep.subr.bf16.mxu0 0
    %155 = vmatpush2.bf16.msra.mxu0 0
    %156 = vmatprep.mubr.bf16.mxu0 0
    %157 = vmatmul.mubr.bf16.gmra.mxu0 %v101
    %v158 = vpop.f32.mrf.mxu0
    %v159 = vadd.f32 0.0, %v158
    %v160 = vpop.f32.mrf.mxu0
    %v161 = vpop.f32.mrf.mxu0
    %v162 = vadd.f32 0.0, %v161
    %v163 = vpop.f32.mrf.mxu0
    %164 = vmatprep.mubr.bf16.mxu0 0
    %165 = vmatmul.mubr.bf16.gmra.mxu0 %v104
    %v166 = vpop.f32.mrf.mxu0
    %v167 = vadd.f32 0.0, %v166
    %v168 = vpop.f32.mrf.mxu0
    %v169 = vpop.f32.mrf.mxu0
    %v170 = vadd.f32 0.0, %v169
    %v171 = vpop.f32.mrf.mxu0
    %172 = vmatprep.mubr.bf16.mxu0 0
    %173 = vmatmul.mubr.bf16.gmra.mxu0 %v107
    %v174 = vpop.f32.mrf.mxu0
    %v175 = vadd.f32 0.0, %v174
    %v176 = vpop.f32.mrf.mxu0
    %v177 = vpop.f32.mrf.mxu0
    %v178 = vadd.f32 0.0, %v177
    %v179 = vpop.f32.mrf.mxu0
    %180 = vmatprep.mubr.bf16.mxu0 0
    %181 = vmatmul.mubr.bf16.gmra.mxu0 %v110
    %v182 = vpop.f32.mrf.mxu0
    %v183 = vadd.f32 0.0, %v182
    %v184 = vpop.f32.mrf.mxu0
    %v185 = vpop.f32.mrf.mxu0
    %v186 = vadd.f32 0.0, %v185
    %v187 = vpop.f32.mrf.mxu0
    %188 = vmatprep.mubr.bf16.mxu0 0
    %189 = vmatmul.mubr.bf16.gmra.mxu0 %v113
    %v190 = vpop.f32.mrf.mxu0
    %v191 = vadd.f32 0.0, %v190
    %v192 = vpop.f32.mrf.mxu0
    %v193 = vpop.f32.mrf.mxu0
    %v194 = vadd.f32 0.0, %v193
    %v195 = vpop.f32.mrf.mxu0
    %196 = vmatprep.mubr.bf16.mxu0 0
    %197 = vmatmul.mubr.bf16.gmra.mxu0 %v116
    %v198 = vpop.f32.mrf.mxu0
    %v199 = vadd.f32 0.0, %v198
    %v200 = vpop.f32.mrf.mxu0
    %v201 = vpop.f32.mrf.mxu0
    %v202 = vadd.f32 0.0, %v201
    %v203 = vpop.f32.mrf.mxu0
    %204 = vmatprep.mubr.bf16.mxu0 0
    %205 = vmatmul.mubr.bf16.gmra.mxu0 %v119
    %v206 = vpop.f32.mrf.mxu0
    %v207 = vadd.f32 0.0, %v206
    %v208 = vpop.f32.mrf.mxu0
    %v209 = vpop.f32.mrf.mxu0
    %v210 = vadd.f32 0.0, %v209
    %v211 = vpop.f32.mrf.mxu0
    %212 = vmatprep.mubr.bf16.mxu0 0
    %213 = vmatmul.mubr.bf16.gmra.mxu0 %v122
    %v214 = vpop.f32.mrf.mxu0
    %v215 = vadd.f32 0.0, %v214
    %v216 = vpop.f32.mrf.mxu0
    %v217 = vpop.f32.mrf.mxu0
    %v218 = vadd.f32 0.0, %v217
    %v219 = vpop.f32.mrf.mxu0
    %220 = vdwg.mxu0
    %v221 = vadd.f32 %v159, %v162
    %v222 = vadd.f32 %v221, %v167
    %v223 = vadd.f32 %v222, %v170
    %v224 = vadd.f32 %v223, %v175
    %v225 = vadd.f32 %v224, %v178
    %v226 = vadd.f32 %v225, %v183
    %v227 = vadd.f32 %v226, %v186
    %v228 = vadd.f32 %v227, %v191
    %v229 = vadd.f32 %v228, %v194
    %v230 = vadd.f32 %v229, %v199
    %v231 = vadd.f32 %v230, %v202
    %v232 = vadd.f32 %v231, %v207
    %v233 = vadd.f32 %v232, %v210
    %v234 = vadd.f32 %v233, %v215
    %v235 = vadd.f32 %v234, %v218
    %v236 = vrot.slane %v235, 4
    %v237 = vadd.f32 %v235, %v236
    %v238 = vrot.slane %v237, 2
    %v239 = vadd.f32 %v237, %v238
    %v240 = vrot.slane %v239, 1
    %v241 = vadd.f32 %v239, %v240
    %v242 = vmul.f32 %v241, 0.0078125
    %v243 = vsub.f32 %v159, %v242
    %v244 = vsub.f32 %v162, %v242
    %v245 = vsub.f32 %v167, %v242
    %v246 = vsub.f32 %v170, %v242
    %v247 = vsub.f32 %v175, %v242
    %v248 = vsub.f32 %v178, %v242
    %v249 = vsub.f32 %v183, %v242
    %v250 = vsub.f32 %v186, %v242
    %v251 = vsub.f32 %v191, %v242
    %v252 = vsub.f32 %v194, %v242
    %v253 = vsub.f32 %v199, %v242
    %v254 = vsub.f32 %v202, %v242
    %v255 = vsub.f32 %v207, %v242
    %v256 = vsub.f32 %v210, %v242
    %v257 = vsub.f32 %v215, %v242
    %v258 = vsub.f32 %v218, %v242
    %v259 = vmul.f32 %v243, %v243
    %v260 = vmul.f32 %v244, %v244
    %v261 = vmul.f32 %v245, %v245
    %v262 = vmul.f32 %v246, %v246
    %v263 = vmul.f32 %v247, %v247
    %v264 = vmul.f32 %v248, %v248
    %v265 = vmul.f32 %v249, %v249
    %v266 = vmul.f32 %v250, %v250
    %v267 = vmul.f32 %v251, %v251
    %v268 = vmul.f32 %v252, %v252
    %v269 = vmul.f32 %v253, %v253
    %v270 = vmul.f32 %v254, %v254
    %v271 = vmul.f32 %v255, %v255
    %v272 = vmul.f32 %v256, %v256
    %v273 = vmul.f32 %v257, %v257
    %v274 = vmul.f32 %v258, %v258
    %v275 = vadd.f32 %v259, %v260
    %v276 = vadd.f32 %v275, %v261
    %v277 = vadd.f32 %v276, %v262
    %v278 = vadd.f32 %v277, %v263
    %v279 = vadd.f32 %v278, %v264
    %v280 = vadd.f32 %v279, %v265
    %v281 = vadd.f32 %v280, %v266
    %v282 = vadd.f32 %v281, %v267
    %v283 = vadd.f32 %v282, %v268
    %v284 = vadd.f32 %v283, %v269
    %v285 = vadd.f32 %v284, %v270
    %v286 = vadd.f32 %v285, %v271
    %v287 = vadd.f32 %v286, %v272
    %v288 = vadd.f32 %v287, %v273
    %v289 = vadd.f32 %v288, %v274
    %v290 = vrot.slane %v289, 4
    %v291 = vadd.f32 %v289, %v290
    %v292 = vrot.slane %v291, 2
    %v293 = vadd.f32 %v291, %v292
    %v294 = vrot.slane %v293, 1
    %v295 = vadd.f32 %v293, %v294
    %v296 = vmul.f32 %v295, 0.0078125
    %v297 = vld [vmem:[%s2] sm:$0x1]
    %v298 = vadd.f32 %v296, 1e-05
    %v299 = vrsqrt.pop %v298
    %v300 = vmul.f32 %v297, %v299
    %v302 = vlaneseq
    %v303 = vshrl.u32 %v302, 7
    %v304 = vsub.s32 0, %v303
    %v305 = vrot.slane %v300, %v304
    %v307 = vmul.f32 %v243, %v305
    %v308 = vmul.f32 %v244, %v305
    %v309 = vmul.f32 %v245, %v305
    %v310 = vmul.f32 %v246, %v305
    %v311 = vmul.f32 %v247, %v305
    %v312 = vmul.f32 %v248, %v305
    %v313 = vmul.f32 %v249, %v305
    %v314 = vmul.f32 %v250, %v305
    %v315 = vmul.f32 %v251, %v305
    %v316 = vmul.f32 %v252, %v305
    %v317 = vmul.f32 %v253, %v305
    %v318 = vmul.f32 %v254, %v305
    %v319 = vmul.f32 %v255, %v305
    %v320 = vmul.f32 %v256, %v305
    %v321 = vmul.f32 %v257, %v305
    %v322 = vmul.f32 %v258, %v305
    %v323 = vld [vmem:[%s3] sm:$0x1]
    %v325 = vlaneseq
    %v326 = vshrl.u32 %v325, 7
    %v327 = vsub.s32 0, %v326
    %v328 = vrot.slane %v323, %v327
    %v330 = vadd.f32 %v307, %v328
    %v331 = vadd.f32 %v308, %v328
    %v332 = vadd.f32 %v309, %v328
    %v333 = vadd.f32 %v310, %v328
    %v334 = vadd.f32 %v311, %v328
    %v335 = vadd.f32 %v312, %v328
    %v336 = vadd.f32 %v313, %v328
    %v337 = vadd.f32 %v314, %v328
    %v338 = vadd.f32 %v315, %v328
    %v339 = vadd.f32 %v316, %v328
    %v340 = vadd.f32 %v317, %v328
    %v341 = vadd.f32 %v318, %v328
    %v342 = vadd.f32 %v319, %v328
    %v343 = vadd.f32 %v320, %v328
    %v344 = vadd.f32 %v321, %v328
    %v345 = vadd.f32 %v322, %v328
    %vm346 = vcmp.gt.f32.partialorder %v330, 0.0
    %vm347 = vcmp.gt.f32.partialorder %v331, 0.0
    %vm348 = vcmp.gt.f32.partialorder %v332, 0.0
    %vm349 = vcmp.gt.f32.partialorder %v333, 0.0
    %vm350 = vcmp.gt.f32.partialorder %v334, 0.0
    %vm351 = vcmp.gt.f32.partialorder %v335, 0.0
    %vm352 = vcmp.gt.f32.partialorder %v336, 0.0
    %vm353 = vcmp.gt.f32.partialorder %v337, 0.0
    %vm354 = vcmp.gt.f32.partialorder %v338, 0.0
    %vm355 = vcmp.gt.f32.partialorder %v339, 0.0
    %vm356 = vcmp.gt.f32.partialorder %v340, 0.0
    %vm357 = vcmp.gt.f32.partialorder %v341, 0.0
    %vm358 = vcmp.gt.f32.partialorder %v342, 0.0
    %vm359 = vcmp.gt.f32.partialorder %v343, 0.0
    %vm360 = vcmp.gt.f32.partialorder %v344, 0.0
    %vm361 = vcmp.gt.f32.partialorder %v345, 0.0
    %v362 = vmin.f32 %v330, 0.0
    %v363 = vmin.f32 %v331, 0.0
    %v364 = vmin.f32 %v332, 0.0
    %v365 = vmin.f32 %v333, 0.0
    %v366 = vmin.f32 %v334, 0.0
    %v367 = vmin.f32 %v335, 0.0
    %v368 = vmin.f32 %v336, 0.0
    %v369 = vmin.f32 %v337, 0.0
    %v370 = vmin.f32 %v338, 0.0
    %v371 = vmin.f32 %v339, 0.0
    %v372 = vmin.f32 %v340, 0.0
    %v373 = vmin.f32 %v341, 0.0
    %v374 = vmin.f32 %v342, 0.0
    %v375 = vmin.f32 %v343, 0.0
    %v376 = vmin.f32 %v344, 0.0
    %v377 = vmin.f32 %v345, 0.0
    %v378 = vmul.f32 %v362, 1.442695
    %v379 = vpow.pop %v378
    %v380 = vmul.f32 %v363, 1.442695
    %v381 = vpow.pop %v380
    %v382 = vmul.f32 %v364, 1.442695
    %v383 = vpow.pop %v382
    %v384 = vmul.f32 %v365, 1.442695
    %v385 = vpow.pop %v384
    %v386 = vmul.f32 %v366, 1.442695
    %v387 = vpow.pop %v386
    %v388 = vmul.f32 %v367, 1.442695
    %v389 = vpow.pop %v388
    %v390 = vmul.f32 %v368, 1.442695
    %v391 = vpow.pop %v390
    %v392 = vmul.f32 %v369, 1.442695
    %v393 = vpow.pop %v392
    %v394 = vmul.f32 %v370, 1.442695
    %v395 = vpow.pop %v394
    %v396 = vmul.f32 %v371, 1.442695
    %v397 = vpow.pop %v396
    %v398 = vmul.f32 %v372, 1.442695
    %v399 = vpow.pop %v398
    %v400 = vmul.f32 %v373, 1.442695
    %v401 = vpow.pop %v400
    %v402 = vmul.f32 %v374, 1.442695
    %v403 = vpow.pop %v402
    %v404 = vmul.f32 %v375, 1.442695
    %v405 = vpow.pop %v404
    %v406 = vmul.f32 %v376, 1.442695
    %v407 = vpow.pop %v406
    %v408 = vmul.f32 %v377, 1.442695
    %v409 = vpow.pop %v408
    %v410 = vsub.f32 %v379, 1.0
    %v411 = vsub.f32 %v381, 1.0
    %v412 = vsub.f32 %v383, 1.0
    %v413 = vsub.f32 %v385, 1.0
    %v414 = vsub.f32 %v387, 1.0
    %v415 = vsub.f32 %v389, 1.0
    %v416 = vsub.f32 %v391, 1.0
    %v417 = vsub.f32 %v393, 1.0
    %v418 = vsub.f32 %v395, 1.0
    %v419 = vsub.f32 %v397, 1.0
    %v420 = vsub.f32 %v399, 1.0
    %v421 = vsub.f32 %v401, 1.0
    %v422 = vsub.f32 %v403, 1.0
    %v423 = vsub.f32 %v405, 1.0
    %v424 = vsub.f32 %v407, 1.0
    %v425 = vsub.f32 %v409, 1.0
    %v426 = vsel %vm346, %v330, %v410
    %v427 = vsel %vm347, %v331, %v411
    %v428 = vsel %vm348, %v332, %v412
    %v429 = vsel %vm349, %v333, %v413
    %v430 = vsel %vm350, %v334, %v414
    %v431 = vsel %vm351, %v335, %v415
    %v432 = vsel %vm352, %v336, %v416
    %v433 = vsel %vm353, %v337, %v417
    %v434 = vsel %vm354, %v338, %v418
    %v435 = vsel %vm355, %v339, %v419
    %v436 = vsel %vm356, %v340, %v420
    %v437 = vsel %vm357, %v341, %v421
    %v438 = vsel %vm358, %v342, %v422
    %v439 = vsel %vm359, %v343, %v423
    %v440 = vsel %vm360, %v344, %v424
    %v441 = vsel %vm361, %v345, %v425
    %v442 = vpack.c.bf16 %v427, %v426
    %v443 = vpack.c.bf16 %v429, %v428
    %v444 = vpack.c.bf16 %v431, %v430
    %v445 = vpack.c.bf16 %v433, %v432
    %v446 = vpack.c.bf16 %v435, %v434
    %v447 = vpack.c.bf16 %v437, %v436
    %v448 = vpack.c.bf16 %v439, %v438
    %v449 = vpack.c.bf16 %v441, %v440
    %v458 = vunpack.c.l.b16 %v442
    %v459 = vunpack.c.h.b16 %v442
    %v460 = vunpack.c.l.b16 %v443
    %v461 = vunpack.c.h.b16 %v443
    %v462 = vunpack.c.l.b16 %v444
    %v463 = vunpack.c.h.b16 %v444
    %v464 = vunpack.c.l.b16 %v445
    %v465 = vunpack.c.h.b16 %v445
    %v466 = vunpack.c.l.b16 %v446
    %v467 = vunpack.c.h.b16 %v446
    %v468 = vunpack.c.l.b16 %v447
    %v469 = vunpack.c.h.b16 %v447
    %v470 = vunpack.c.l.b16 %v448
    %v471 = vunpack.c.h.b16 %v448
    %v472 = vunpack.c.l.b16 %v449
    %v473 = vunpack.c.h.b16 %v449
    %v474 = vpack.c.b16 %v458, %v458
    %v475 = vpack.c.b16 %v459, %v459
    %v476 = vpack.c.b16 %v460, %v460
    %v477 = vpack.c.b16 %v461, %v461
    %v478 = vpack.c.b16 %v462, %v462
    %v479 = vpack.c.b16 %v463, %v463
    %v480 = vpack.c.b16 %v464, %v464
    %v481 = vpack.c.b16 %v465, %v465
    %v482 = vpack.c.b16 %v466, %v466
    %v483 = vpack.c.b16 %v467, %v467
    %v484 = vpack.c.b16 %v468, %v468
    %v485 = vpack.c.b16 %v469, %v469
    %v486 = vpack.c.b16 %v470, %v470
    %v487 = vpack.c.b16 %v471, %v471
    %v488 = vpack.c.b16 %v472, %v472
    %v489 = vpack.c.b16 %v473, %v473
    %506 = vst [vmem:[#allocation2] sm:$0xf] %v474
    %507 = vst [vmem:[#allocation2 + $0x4] sm:$0xf] %v475
    %508 = vst [vmem:[#allocation2 + $0x8] sm:$0xf] %v476
    %509 = vst [vmem:[#allocation2 + $0xc] sm:$0xf] %v477
    %510 = vst [vmem:[#allocation2 + $0x10] sm:$0xf] %v478
    %511 = vst [vmem:[#allocation2 + $0x14] sm:$0xf] %v479
    %512 = vst [vmem:[#allocation2 + $0x18] sm:$0xf] %v480
    %513 = vst [vmem:[#allocation2 + $0x1c] sm:$0xf] %v481
    %514 = vst [vmem:[#allocation2 + $0x20] sm:$0xf] %v482
    %515 = vst [vmem:[#allocation2 + $0x24] sm:$0xf] %v483
    %516 = vst [vmem:[#allocation2 + $0x28] sm:$0xf] %v484
    %517 = vst [vmem:[#allocation2 + $0x2c] sm:$0xf] %v485
    %518 = vst [vmem:[#allocation2 + $0x30] sm:$0xf] %v486
    %519 = vst [vmem:[#allocation2 + $0x34] sm:$0xf] %v487
    %520 = vst [vmem:[#allocation2 + $0x38] sm:$0xf] %v488
    %521 = vst [vmem:[#allocation2 + $0x3c] sm:$0xf] %v489
    // Predicated region
    $region18: #{tpu_custom_call.1} parent=1 // pred_check
      _
    $region19: #{tpu_custom_call.1} parent=1 // pred_check_branch
      %523 = sbr.rel (0) target = $region21
    $region20: #{tpu_custom_call.1} parent=1 // pred_region
      %s525 = ssub.s32 1024, 1024
      %526 = vsyncadd [#allocation3], %s525
      %s527 = sshll.u32 [#allocation2], 4
      %s528 = int_to_ptr.vmem [resolvable:$true] %s527
      %533 = dma.vmem_to_hbm [thread:$0]  %s528, 1024, %s4, [#allocation3], 64, 64, 4
    $region21: #{tpu_custom_call.1} parent=1 // pred_fallthru
      _
    // Predicated region
    $region22: #{tpu_custom_call.1} parent=1 // pred_check
      _
    $region23: #{tpu_custom_call.1} parent=1 // pred_check_branch
      %535 = sbr.rel (0) target = $region25
    $region24: #{tpu_custom_call.1} parent=1 // pred_region
      %536 = dma.done [#allocation3], 1024
    $region25: #{tpu_custom_call.1} parent=1 // pred_fallthru
      _
    %537 = vsyncpa [#allocation3], 1

</llo_original>
